<compile_context>
chip_gen: v6e
topology: v6e:2x2x1
jax: 0.10.0
libtpu: 0.0.40
codegen_flags: <defaults>
</compile_context>

<pallas_src>
import math

import jax
import jax.numpy as jnp
from jax.experimental import pallas as pl
from jax.experimental.pallas import tpu as pltpu


# ----------------------------- Pallas kernels ------------------------------ #

def _gcn_en2_fused_kernel(x_ref, adj_ref, w1_ref, b1_ref, w2_ref, b2_ref, o_ref):
    """Whole 2-layer GCN forward in one VMEM-resident step (small graphs)."""
    adj = adj_ref[...]                                              # (N, N)
    s1 = jnp.dot(x_ref[...], w1_ref[...],
                 preferred_element_type=jnp.float32)                # (N, nhid)
    h1 = jnp.dot(adj, s1, preferred_element_type=jnp.float32) + b1_ref[...]
    h1 = jnp.maximum(h1, 0.0)        # ReLU; dropout is identity in eval mode
    s2 = jnp.dot(h1, w2_ref[...],
                 preferred_element_type=jnp.float32)                # (N, nembed)
    h2 = jnp.dot(adj, s2, preferred_element_type=jnp.float32) + b2_ref[...]
    o_ref[...] = jnp.maximum(h2, 0.0)


def _support_kernel(x_ref, w_ref, o_ref):
    """support = x @ W for one row tile (stored in the adjacency stream dtype)."""
    o_ref[...] = jnp.dot(x_ref[...], w_ref[...],
                         preferred_element_type=jnp.float32).astype(o_ref.dtype)


def _gcn_agg_kernel(adj_ref, supp_ref, b_ref, o_ref):
    """out_rows = relu(adj_rows @ support + b); f32 accumulation, f32 output."""
    y = jnp.dot(adj_ref[...], supp_ref[...],
                preferred_element_type=jnp.float32) + b_ref[...]
    o_ref[...] = jnp.maximum(y, 0.0)


# ----------------------------- sizing helpers ------------------------------ #

def _round_up(v, m):
    return ((v + m - 1) // m) * m


def _vmem_budget_bytes():
    """~80% of this generation's physical VMEM (128 MiB v5e/v6e, 64 MiB v7x)."""
    try:
        cap = int(pltpu.get_tpu_info().vmem_capacity_bytes)
    except Exception:
        cap = 64 << 20                        # conservative (v7x-sized) fallback
    return max(int(cap * 0.80), 16 << 20)


def _vmem_limit(nbytes, budget):
    """Exact footprint + 15% headroom, never more than the budget."""
    return int(min(max(int(nbytes * 1.15), 8 << 20), budget))


_TM_CANDIDATES = (1024, 512, 256, 128, 64, 32, 16)


def _pick_row_tile(n_cols, fout, stream_bpe, resident_bytes, budget):
    """Largest adjacency row tile whose double-buffered slabs fit the budget."""
    for tm in _TM_CANDIDATES:
        streamed = 2 * tm * n_cols * stream_bpe + 2 * tm * fout * 4
        if resident_bytes + streamed <= int(budget * 0.85):
            return tm
    return _TM_CANDIDATES[-1]


def _fused_bytes(N, nfeat, nhid, nembed):
    return 4 * (N * nfeat + N * N + nfeat * nhid + nhid * nembed
                + nhid + nembed + 2 * N * nhid + 2 * N * nembed)


# ----------------------------- pallas_call wrappers ------------------------- #

def _fused_forward(x, adj, W1, b1, W2, b2, budget):
    N = x.shape[0]
    nhid, nembed = W1.shape[1], W2.shape[1]
    nbytes = _fused_bytes(N, x.shape[1], nhid, nembed)
    return pl.pallas_call(
        _gcn_en2_fused_kernel,
        out_shape=jax.ShapeDtypeStruct((N, nembed), jnp.float32),
        in_specs=[pl.BlockSpec(memory_space=pltpu.MemorySpace.VMEM)] * 6,
        out_specs=pl.BlockSpec(memory_space=pltpu.MemorySpace.VMEM),
        compiler_params=pltpu.CompilerParams(
            vmem_limit_bytes=_vmem_limit(nbytes, budget)),
    )(x, adj, W1, b1.reshape(1, nhid), W2, b2.reshape(1, nembed))


def _support_matmul(x, W, *, tm, out_dtype, budget):
    """support = x @ W, row-tiled, output stored in `out_dtype`."""
    Np, fin = x.shape
    fout = W.shape[1]
    assert Np % tm == 0, (Np, tm)
    out_bpe = jnp.dtype(out_dtype).itemsize
    nbytes = 4 * fin * fout + 2 * tm * fin * 4 + 2 * tm * fout * out_bpe
    return pl.pallas_call(
        _support_kernel,
        out_shape=jax.ShapeDtypeStruct((Np, fout), out_dtype),
        grid=(Np // tm,),
        in_specs=[pl.BlockSpec((tm, fin), lambda i: (i, 0)),     # x rows (streamed)
                  pl.BlockSpec((fin, fout), lambda i: (0, 0))],  # W (resident)
        out_specs=pl.BlockSpec((tm, fout), lambda i: (i, 0)),
        compiler_params=pltpu.CompilerParams(
            dimension_semantics=("parallel",),
            vmem_limit_bytes=_vmem_limit(nbytes, budget)),
    )(x, W)


def _gcn_aggregate(adj_p, supp, b, *, tm, budget):
    """relu(adj @ support + b) with adj streamed in (tm, Np) row slabs."""
    Np = adj_p.shape[0]
    fout = supp.shape[1]
    assert Np % tm == 0, (Np, tm)
    adj_bpe = jnp.dtype(adj_p.dtype).itemsize
    supp_bpe = jnp.dtype(supp.dtype).itemsize
    nbytes = (Np * fout * supp_bpe + 4 * fout       # resident: support + bias
              + 2 * tm * Np * adj_bpe               # streamed adj (double-buffered)
              + 2 * tm * fout * 4)                  # streamed output tiles
    return pl.pallas_call(
        _gcn_agg_kernel,
        out_shape=jax.ShapeDtypeStruct((Np, fout), jnp.float32),
        grid=(Np // tm,),
        in_specs=[pl.BlockSpec((tm, Np), lambda i: (i, 0)),      # adj rows (streamed)
                  pl.BlockSpec((Np, fout), lambda i: (0, 0)),    # support (resident)
                  pl.BlockSpec((1, fout), lambda i: (0, 0))],    # bias (resident)
        out_specs=pl.BlockSpec((tm, fout), lambda i: (i, 0)),
        compiler_params=pltpu.CompilerParams(
            # No cross-step state (support precomputed) -> row axis is truly
            # independent; shards across both TensorCores on v7x.
            dimension_semantics=("parallel",),
            vmem_limit_bytes=_vmem_limit(nbytes, budget)),
    )(adj_p, supp, b.reshape(1, fout))


# ----------------------------- forward -------------------------------------- #

def _tiled_forward(x, adj, params, *, stream_dtype):
    N, _ = x.shape
    nhid = params["W1"].shape[1]
    nembed = params["W2"].shape[1]
    budget = _vmem_budget_bytes()
    bpe = jnp.dtype(stream_dtype).itemsize
    max_fout = max(nhid, nembed)

    # Pick the biggest VMEM-legal adjacency row tile, then minimise padding:
    # for the implied number of row blocks g, shrink the tile to just cover N.
    resident = bpe * N * max_fout + 4 * max_fout
    tm_budget = _pick_row_tile(N, max_fout, bpe, resident, budget)
    g = max(1, -(-N // tm_budget))
    tm = _round_up(-(-N // g), 16)          # multiple of 16 (bf16 sublane pack)
    Np = g * tm
    pad = Np - N

    if pad:
        x_p = jnp.pad(x, ((0, pad), (0, 0)))
        adj_p = jnp.pad(adj, ((0, pad), (0, pad))).astype(stream_dtype)
    else:
        x_p = x
        adj_p = adj.astype(stream_dtype)

    supp1 = _support_matmul(x_p, params["W1"], tm=tm, out_dtype=stream_dtype,
                            budget=budget)
    h1 = _gcn_aggregate(adj_p, supp1, params["b1"], tm=tm, budget=budget)
    supp2 = _support_matmul(h1, params["W2"], tm=tm, out_dtype=stream_dtype,
                            budget=budget)
    h2 = _gcn_aggregate(adj_p, supp2, params["b2"], tm=tm, budget=budget)
    return h2[:N] if pad else h2


def gcn_en2_forward(x, adj, params, *, adj_stream_dtype=jnp.bfloat16,
                    force_tiled=False):
    """GCN_En2 forward (eval mode)."""
    N, nfeat = x.shape
    nhid = params["W1"].shape[1]
    nembed = params["W2"].shape[1]
    budget = _vmem_budget_bytes()

    # Small graphs: everything (both layers) fits comfortably in VMEM -> one
    # fused kernel launch, no intermediate HBM round-trips.  Gate on the
    # actual byte footprint, not just N.
    if not force_tiled and _fused_bytes(N, nfeat, nhid, nembed) <= 0.6 * budget:
        return _fused_forward(x, adj, params["W1"], params["b1"],
                              params["W2"], params["b2"], budget)
    return _tiled_forward(x, adj, params, stream_dtype=adj_stream_dtype)


# ----------------------------- parameter init / reference ------------------- #

def init_params(key, nfeat, nhid, nembed):
    """Matches GraphConvolution.reset_parameters: U(-1/sqrt(out), 1/sqrt(out))."""
    k1, k2, k3, k4 = jax.random.split(key, 4)
    s1 = 1.0 / math.sqrt(nhid)
    s2 = 1.0 / math.sqrt(nembed)
    return {
        "W1": jax.random.uniform(k1, (nfeat, nhid), jnp.float32, -s1, s1),
        "b1": jax.random.uniform(k2, (nhid,), jnp.float32, -s1, s1),
        "W2": jax.random.uniform(k3, (nhid, nembed), jnp.float32, -s2, s2),
        "b2": jax.random.uniform(k4, (nembed,), jnp.float32, -s2, s2),
    }


def gcn_en2_reference(x, adj, params):
    hp = jax.lax.Precision.HIGHEST
    s1 = jnp.dot(x, params["W1"], precision=hp)
    h1 = jnp.maximum(jnp.dot(adj, s1, precision=hp) + params["b1"], 0.0)
    s2 = jnp.dot(h1, params["W2"], precision=hp)
    return jnp.maximum(jnp.dot(adj, s2, precision=hp) + params["b2"], 0.0)


def _make_graph(key, N, nfeat, density):
    k_x, k_adj = jax.random.split(key)
    x = jax.random.normal(k_x, (N, nfeat), jnp.float32)
    adj = (jax.random.uniform(k_adj, (N, N)) < density).astype(jnp.float32)
    adj = jnp.maximum(adj, jnp.eye(N, dtype=jnp.float32))
    adj = adj / jnp.sum(adj, axis=1, keepdims=True)     # row-normalized
    return x, adj


# ----------------------------- main ----------------------------------------- #

if __name__ == "__main__":
    nfeat, nhid, nembed = 12, 8, 16
    key = jax.random.PRNGKey(0)
    k_g, k_p = jax.random.split(key)
    params = init_params(k_p, nfeat, nhid, nembed)

    # 1) Small graph -> fused single-step path (pure f32).
    N = 16
    x, adj = _make_graph(k_g, N, nfeat, density=0.3)
    out = jax.block_until_ready(gcn_en2_forward(x, adj, params))
    ref = gcn_en2_reference(x, adj, params)
    assert out.shape == (N, nembed), out.shape
    assert bool(jnp.all(jnp.isfinite(out)))
    assert bool(jnp.allclose(out, ref, atol=1e-2, rtol=1e-2))

    # 2) Row-tiled streaming path with f32 adjacency and N NOT a multiple of
    #    the row tile (exercises the padding path).
    N2 = 200
    x2, adj2 = _make_graph(jax.random.PRNGKey(1), N2, nfeat, density=0.05)
    out2 = jax.block_until_ready(
        gcn_en2_forward(x2, adj2, params, adj_stream_dtype=jnp.float32,
                        force_tiled=True))
    ref2 = gcn_en2_reference(x2, adj2, params)
    assert out2.shape == (N2, nembed), out2.shape
    assert bool(jnp.allclose(out2, ref2, atol=1e-2, rtol=1e-2))

    # 3) Row-tiled streaming path with bf16 adjacency (the default large-graph
    #    configuration): validate against the f32 reference with looser tol.
    N3 = 256
    x3, adj3 = _make_graph(jax.random.PRNGKey(2), N3, nfeat, density=0.05)
    out3 = jax.block_until_ready(
        gcn_en2_forward(x3, adj3, params, force_tiled=True))
    ref3 = gcn_en2_reference(x3, adj3, params)
    assert out3.shape == (N3, nembed), out3.shape
    assert bool(jnp.all(jnp.isfinite(out3)))
    assert bool(jnp.allclose(out3, ref3, atol=5e-2, rtol=5e-2))

    print("KERNEL_OK")
</pallas_src>

<mosaic_0001>
module attributes {stable_mosaic.version = 11 : i64} {
  func.func @_gcn_en2_fused_kernel(%arg0: memref<16x12xf32, #tpu.memory_space<vmem>>, %arg1: memref<16x16xf32, #tpu.memory_space<vmem>>, %arg2: memref<12x8xf32, #tpu.memory_space<vmem>>, %arg3: memref<1x8xf32, #tpu.memory_space<vmem>>, %arg4: memref<8x16xf32, #tpu.memory_space<vmem>>, %arg5: memref<1x16xf32, #tpu.memory_space<vmem>>, %arg6: memref<16x16xf32, #tpu.memory_space<vmem>>) attributes {dimension_semantics = [], scalar_prefetch = 0 : i64, scratch_operands = 0 : i64, tpu.core_type = #tpu.core_type<tc>} {
    %c0 = arith.constant 0 : index
    %c0_0 = arith.constant 0 : index
    %0 = vector.load %arg1[%c0, %c0_0] : memref<16x16xf32, #tpu.memory_space<vmem>>, vector<16x16xf32>
    %c0_1 = arith.constant 0 : index
    %c0_2 = arith.constant 0 : index
    %1 = vector.load %arg0[%c0_1, %c0_2] : memref<16x12xf32, #tpu.memory_space<vmem>>, vector<16x12xf32>
    %c0_3 = arith.constant 0 : index
    %c0_4 = arith.constant 0 : index
    %2 = vector.load %arg2[%c0_3, %c0_4] : memref<12x8xf32, #tpu.memory_space<vmem>>, vector<12x8xf32>
    %cst = arith.constant dense<0.000000e+00> : vector<16x8xf32>
    %3 = tpu.matmul %1, %2, %cst {dimension_numbers = #tpu.dot_dimension_numbers<[1], [0], [0], [1], [0, 0, 1, 1], [], []>} : vector<16x12xf32>, vector<12x8xf32>, vector<16x8xf32> -> vector<16x8xf32>
    %cst_5 = arith.constant dense<0.000000e+00> : vector<16x8xf32>
    %4 = tpu.matmul %0, %3, %cst_5 {dimension_numbers = #tpu.dot_dimension_numbers<[1], [0], [0], [1], [0, 0, 1, 1], [], []>} : vector<16x16xf32>, vector<16x8xf32>, vector<16x8xf32> -> vector<16x8xf32>
    %c0_6 = arith.constant 0 : index
    %c0_7 = arith.constant 0 : index
    %5 = vector.load %arg3[%c0_6, %c0_7] : memref<1x8xf32, #tpu.memory_space<vmem>>, vector<1x8xf32>
    %6 = vector.broadcast %5 : vector<1x8xf32> to vector<16x8xf32>
    %7 = arith.addf %4, %6 : vector<16x8xf32>
    %cst_8 = arith.constant 0.000000e+00 : f32
    %8 = vector.broadcast %cst_8 : f32 to vector<16x8xf32>
    %9 = arith.maximumf %7, %8 : vector<16x8xf32>
    %c0_9 = arith.constant 0 : index
    %c0_10 = arith.constant 0 : index
    %10 = vector.load %arg4[%c0_9, %c0_10] : memref<8x16xf32, #tpu.memory_space<vmem>>, vector<8x16xf32>
    %cst_11 = arith.constant dense<0.000000e+00> : vector<16x16xf32>
    %11 = tpu.matmul %9, %10, %cst_11 {dimension_numbers = #tpu.dot_dimension_numbers<[1], [0], [0], [1], [0, 0, 1, 1], [], []>} : vector<16x8xf32>, vector<8x16xf32>, vector<16x16xf32> -> vector<16x16xf32>
    %cst_12 = arith.constant dense<0.000000e+00> : vector<16x16xf32>
    %12 = tpu.matmul %0, %11, %cst_12 {dimension_numbers = #tpu.dot_dimension_numbers<[1], [0], [0], [1], [0, 0, 1, 1], [], []>} : vector<16x16xf32>, vector<16x16xf32>, vector<16x16xf32> -> vector<16x16xf32>
    %c0_13 = arith.constant 0 : index
    %c0_14 = arith.constant 0 : index
    %13 = vector.load %arg5[%c0_13, %c0_14] : memref<1x16xf32, #tpu.memory_space<vmem>>, vector<1x16xf32>
    %14 = vector.broadcast %13 : vector<1x16xf32> to vector<16x16xf32>
    %15 = arith.addf %12, %14 : vector<16x16xf32>
    %cst_15 = arith.constant 0.000000e+00 : f32
    %16 = vector.broadcast %cst_15 : f32 to vector<16x16xf32>
    %17 = arith.maximumf %15, %16 : vector<16x16xf32>
    %c0_16 = arith.constant 0 : index
    %c0_17 = arith.constant 0 : index
    %18 = vector.load %arg6[%c0_16, %c0_17] : memref<16x16xf32, #tpu.memory_space<vmem>>, vector<16x16xf32>
    tpu.vector_store %arg6[%c0_16, %c0_17], %17 {strides = array<i32>} : memref<16x16xf32, #tpu.memory_space<vmem>>, vector<16x16xf32>,
    return
  }
}

</mosaic_0001>

<llo_original>
// kernel: tpu_custom_call.1
$region0: #{tpu_custom_call.1}
  #allocation0 [shape = 'u32[]', space=smem, size = 0x4, offset = 0x4, fixed_abs, tag = 'smem constant byte address 0x4 - core index']
  #allocation1 [shape = 'u32[144,128]{1,0:T(1,128)}', space=vmem, size = 0x12000, scoped, tag = 'internal scratch']
  %s0 = inlined_call_operand.vmem [shape: f32[16,12], index: 0, kind: input, shape index: {}]
  %s1 = inlined_call_operand.hbm [shape: f32[16,16], index: 1, kind: input, shape index: {}]
  %s2 = inlined_call_operand.vmem [shape: f32[12,8], index: 2, kind: input, shape index: {}]
  %s3 = inlined_call_operand.vmem [shape: f32[1,8], index: 3, kind: input, shape index: {}]
  %s4 = inlined_call_operand.vmem [shape: f32[8,16], index: 4, kind: input, shape index: {}]
  %s5 = inlined_call_operand.vmem [shape: f32[1,16], index: 5, kind: input, shape index: {}]
  %s6 = inlined_call_operand.hbm [shape: f32[16,16], index: 6, kind: output, shape index: {}]
  %s7 = sld [smem:[#allocation0]]
  $region38: #{tpu_custom_call.1} parent=0
    _
  %s9 = ssub.s32 1, %s7
  %s10 = scalar_select 0, %s9, %s7
  $region1: #{tpu_custom_call.1} parent=0
    #allocation2 [shape = 'u8[8192]{0}', space=vmem, size = 0x2000, scoped, tag = 'input window, operand 1, single buffered']
    #allocation3 [shape = 's32[1]{0}', space=sflag, size = 0x4, scoped, tag = 'scoped memory for tpu_custom_call.1']
    #allocation4 [shape = 's32[1]{0}', space=sflag, size = 0x4, scoped, tag = 'scoped memory for tpu_custom_call.1']
    #allocation5 [shape = 'u8[8192]{0}', space=vmem, size = 0x2000, scoped, tag = 'output window, operand 0, single buffered']
    %11 = vsyncpa [#allocation3], 0
    %12 = vsyncpa [#allocation4], 0
    // Predicated region
    $region2: #{tpu_custom_call.1} parent=1 // pred_check
      _
    $region3: #{tpu_custom_call.1} parent=1 // pred_check_branch
      %14 = sbr.rel (0) target = $region5
    $region4: #{tpu_custom_call.1} parent=1 // pred_region
      _
    $region5: #{tpu_custom_call.1} parent=1 // pred_fallthru
      _
    // Predicated region
    $region6: #{tpu_custom_call.1} parent=1 // pred_check
      _
    $region7: #{tpu_custom_call.1} parent=1 // pred_check_branch
      %16 = sbr.rel (0) target = $region9
    $region8: #{tpu_custom_call.1} parent=1 // pred_region
      %s18 = ssub.s32 256, 256
      %19 = vsyncadd [#allocation3], %s18
      %s20 = sshll.u32 [#allocation2], 4
      %s21 = int_to_ptr.vmem [resolvable:$true] %s20
      %26 = dma.hbm_to_vmem [thread:$0]  %s1, 256, %s21, [#allocation3], 128, 128, 8
    $region9: #{tpu_custom_call.1} parent=1 // pred_fallthru
      _
    // Predicated region
    $region10: #{tpu_custom_call.1} parent=1 // pred_check
      _
    $region11: #{tpu_custom_call.1} parent=1 // pred_check_branch
      %28 = sbr.rel (0) target = $region13
    $region12: #{tpu_custom_call.1} parent=1 // pred_region
      _
    $region13: #{tpu_custom_call.1} parent=1 // pred_fallthru
      _
    // Predicated region
    $region14: #{tpu_custom_call.1} parent=1 // pred_check
      _
    $region15: #{tpu_custom_call.1} parent=1 // pred_check_branch
      %30 = sbr.rel (0) target = $region17
    $region16: #{tpu_custom_call.1} parent=1 // pred_region
      _
    $region17: #{tpu_custom_call.1} parent=1 // pred_fallthru
      _
    // Predicated region
    $region18: #{tpu_custom_call.1} parent=1 // pred_check
      _
    $region19: #{tpu_custom_call.1} parent=1 // pred_check_branch
      %32 = sbr.rel (0) target = $region21
    $region20: #{tpu_custom_call.1} parent=1 // pred_region
      _
    $region21: #{tpu_custom_call.1} parent=1 // pred_fallthru
      _
    // Predicated region
    $region22: #{tpu_custom_call.1} parent=1 // pred_check
      _
    $region23: #{tpu_custom_call.1} parent=1 // pred_check_branch
      %34 = sbr.rel (0) target = $region25
    $region24: #{tpu_custom_call.1} parent=1 // pred_region
      _
    $region25: #{tpu_custom_call.1} parent=1 // pred_fallthru
      _
    // Predicated region
    $region26: #{tpu_custom_call.1} parent=1 // pred_check
      _
    $region27: #{tpu_custom_call.1} parent=1 // pred_check_branch
      %36 = sbr.rel (0) target = $region29
    $region28: #{tpu_custom_call.1} parent=1 // pred_region
      %37 = dma.done [#allocation3], 256
    $region29: #{tpu_custom_call.1} parent=1 // pred_fallthru
      _
    %v38 = vld [vmem:[#allocation2] sm:$0xff]
    %v39 = vld [vmem:[#allocation2 + $0x8] sm:$0xff]
    %v40 = vld [vmem:[%s0] sm:$0xff]
    %v41 = vld [vmem:[%s0 + $0x8] sm:$0xff]
    %v42 = vld [vmem:[%s2] sm:$0xff]
    %v43 = vld [vmem:[%s2 + $0x8] sm:$0xf]
    %vm44 = vcmask 97280
    %v46 = vsel %vm44, %v40, 0
    %v49 = vsel %vm44, %v41, 0
    %vm51 = vcmask 1043456
    %v53 = vsel %vm51, %v43, 0
    %55 = vmatprep.subr.mxu0 0.0
    %56 = vmatpush1.msra.mxu0 0.0
    %57 = vmatprep.subr.mxu0 0.0
    %58 = vmatpush1.msra.mxu0 0.0
    %59 = vmatprep.subr.mxu0 0.0
    %60 = vmatpush1.msra.mxu0 0.0
    %61 = vmatprep.subr.mxu0 0.0
    %62 = vmatpush1.msra.mxu0 0.0
    %63 = vmatprep.subr.mxu0 0.0
    %64 = vmatpush1.msra.mxu0 0.0
    %65 = vmatprep.subr.mxu0 0.0
    %66 = vmatpush1.msra.mxu0 0.0
    %67 = vmatprep.subr.mxu0 0.0
    %68 = vmatpush1.msra.mxu0 0.0
    %69 = vmatprep.subr.mxu0 0.0
    %70 = vmatpush1.msra.mxu0 0.0
    %71 = vmatprep.subr.mxu0 0.0
    %72 = vmatpush1.msra.mxu0 0.0
    %73 = vmatprep.subr.mxu0 0.0
    %74 = vmatpush1.msra.mxu0 0.0
    %75 = vmatprep.subr.mxu0 0.0
    %76 = vmatpush1.msra.mxu0 0.0
    %77 = vmatprep.subr.mxu0 0.0
    %78 = vmatpush1.msra.mxu0 0.0
    %79 = vmatprep.subr.mxu0 0.0
    %80 = vmatpush1.msra.mxu0 0.0
    %81 = vmatprep.subr.mxu0 0.0
    %82 = vmatpush1.msra.mxu0 0.0
    %83 = vmatprep.subr.mxu0 0.0
    %84 = vmatpush1.msra.mxu0 %v53
    %85 = vmatprep.subr.mxu0 0.0
    %86 = vmatpush1.msra.mxu0 %v42
    %87 = vmatprep.subr.mxu0 0.0
    %88 = vmatpush2.msra.mxu0 0.0
    %89 = vmatprep.subr.mxu0 0.0
    %90 = vmatpush2.msra.mxu0 0.0
    %91 = vmatprep.subr.mxu0 0.0
    %92 = vmatpush2.msra.mxu0 0.0
    %93 = vmatprep.subr.mxu0 0.0
    %94 = vmatpush2.msra.mxu0 0.0
    %95 = vmatprep.subr.mxu0 0.0
    %96 = vmatpush2.msra.mxu0 0.0
    %97 = vmatprep.subr.mxu0 0.0
    %98 = vmatpush2.msra.mxu0 0.0
    %99 = vmatprep.subr.mxu0 0.0
    %100 = vmatpush2.msra.mxu0 0.0
    %101 = vmatprep.subr.mxu0 0.0
    %102 = vmatpush2.msra.mxu0 0.0
    %103 = vmatprep.subr.mxu0 0.0
    %104 = vmatpush2.msra.mxu0 0.0
    %105 = vmatprep.subr.mxu0 0.0
    %106 = vmatpush2.msra.mxu0 0.0
    %107 = vmatprep.subr.mxu0 0.0
    %108 = vmatpush2.msra.mxu0 0.0
    %109 = vmatprep.subr.mxu0 0.0
    %110 = vmatpush2.msra.mxu0 0.0
    %111 = vmatprep.subr.mxu0 0.0
    %112 = vmatpush2.msra.mxu0 0.0
    %113 = vmatprep.subr.mxu0 0.0
    %114 = vmatpush2.msra.mxu0 0.0
    %115 = vmatprep.subr.mxu0 0.0
    %116 = vmatpush2.msra.mxu0 0.0
    %117 = vmatprep.subr.mxu0 0.0
    %118 = vmatpush2.msra.mxu0 0.0
    %119 = vmatprep.mubr.f32.mxu0 0.0
    %120 = vmatmul.mubr.f32.gmra.mxu0 %v46
    %v121 = vpop.f32.mrf.mxu0
    %v122 = vadd.f32 0.0, %v121
    %v123 = vpop.f32.mrf.mxu0
    %124 = vmatprep.mubr.f32.mxu0 0.0
    %125 = vmatmul.mubr.f32.gmra.mxu0 %v49
    %v126 = vpop.f32.mrf.mxu0
    %v127 = vadd.f32 0.0, %v126
    %v128 = vpop.f32.mrf.mxu0
    %129 = vdwg.mxu0
    %v130 = vld [vmem:[%s3] sm:$0x1]
    %v132 = vlaneseq
    %v133 = vshrl.u32 %v132, 7
    %v134 = vsub.s32 0, %v133
    %v135 = vrot.slane %v130, %v134
    %vm137 = vcmask 130048
    %v139 = vsel %vm137, %v38, 0
    %v142 = vsel %vm137, %v39, 0
    %144 = vmatprep.subr.mxu0 0.0
    %145 = vmatpush1.msra.mxu0 0.0
    %146 = vmatprep.subr.mxu0 0.0
    %147 = vmatpush1.msra.mxu0 0.0
    %148 = vmatprep.subr.mxu0 0.0
    %149 = vmatpush1.msra.mxu0 0.0
    %150 = vmatprep.subr.mxu0 0.0
    %151 = vmatpush1.msra.mxu0 0.0
    %152 = vmatprep.subr.mxu0 0.0
    %153 = vmatpush1.msra.mxu0 0.0
    %154 = vmatprep.subr.mxu0 0.0
    %155 = vmatpush1.msra.mxu0 0.0
    %156 = vmatprep.subr.mxu0 0.0
    %157 = vmatpush1.msra.mxu0 0.0
    %158 = vmatprep.subr.mxu0 0.0
    %159 = vmatpush1.msra.mxu0 0.0
    %160 = vmatprep.subr.mxu0 0.0
    %161 = vmatpush1.msra.mxu0 0.0
    %162 = vmatprep.subr.mxu0 0.0
    %163 = vmatpush1.msra.mxu0 0.0
    %164 = vmatprep.subr.mxu0 0.0
    %165 = vmatpush1.msra.mxu0 0.0
    %166 = vmatprep.subr.mxu0 0.0
    %167 = vmatpush1.msra.mxu0 0.0
    %168 = vmatprep.subr.mxu0 0.0
    %169 = vmatpush1.msra.mxu0 0.0
    %170 = vmatprep.subr.mxu0 0.0
    %171 = vmatpush1.msra.mxu0 0.0
    %172 = vmatprep.subr.mxu0 0.0
    %173 = vmatpush1.msra.mxu0 %v127
    %174 = vmatprep.subr.mxu0 0.0
    %175 = vmatpush1.msra.mxu0 %v122
    %176 = vmatprep.subr.mxu0 0.0
    %177 = vmatpush2.msra.mxu0 0.0
    %178 = vmatprep.subr.mxu0 0.0
    %179 = vmatpush2.msra.mxu0 0.0
    %180 = vmatprep.subr.mxu0 0.0
    %181 = vmatpush2.msra.mxu0 0.0
    %182 = vmatprep.subr.mxu0 0.0
    %183 = vmatpush2.msra.mxu0 0.0
    %184 = vmatprep.subr.mxu0 0.0
    %185 = vmatpush2.msra.mxu0 0.0
    %186 = vmatprep.subr.mxu0 0.0
    %187 = vmatpush2.msra.mxu0 0.0
    %188 = vmatprep.subr.mxu0 0.0
    %189 = vmatpush2.msra.mxu0 0.0
    %190 = vmatprep.subr.mxu0 0.0
    %191 = vmatpush2.msra.mxu0 0.0
    %192 = vmatprep.subr.mxu0 0.0
    %193 = vmatpush2.msra.mxu0 0.0
    %194 = vmatprep.subr.mxu0 0.0
    %195 = vmatpush2.msra.mxu0 0.0
    %196 = vmatprep.subr.mxu0 0.0
    %197 = vmatpush2.msra.mxu0 0.0
    %198 = vmatprep.subr.mxu0 0.0
    %199 = vmatpush2.msra.mxu0 0.0
    %200 = vmatprep.subr.mxu0 0.0
    %201 = vmatpush2.msra.mxu0 0.0
    %202 = vmatprep.subr.mxu0 0.0
    %203 = vmatpush2.msra.mxu0 0.0
    %204 = vmatprep.subr.mxu0 0.0
    %205 = vmatpush2.msra.mxu0 0.0
    %206 = vmatprep.subr.mxu0 0.0
    %207 = vmatpush2.msra.mxu0 0.0
    %208 = vmatprep.mubr.f32.mxu0 0.0
    %209 = vmatmul.mubr.f32.gmra.mxu0 %v139
    %v210 = vpop.f32.mrf.mxu0
    %v211 = vadd.f32 %v135, %v210
    %v212 = vpop.f32.mrf.mxu0
    %213 = vmatprep.mubr.f32.mxu0 0.0
    %214 = vmatmul.mubr.f32.gmra.mxu0 %v142
    %v215 = vpop.f32.mrf.mxu0
    %v216 = vadd.f32 %v135, %v215
    %v217 = vpop.f32.mrf.mxu0
    %218 = vdwg.mxu0
    %v219 = vmax.f32 %v211, 0.0
    %v220 = vmax.f32 %v216, 0.0
    %v221 = vld [vmem:[%s4] sm:$0xff]
    %vm222 = vcmask 64512
    %v224 = vsel %vm222, %v219, 0
    %v227 = vsel %vm222, %v220, 0
    %229 = vmatprep.subr.mxu0 0.0
    %230 = vmatpush1.msra.mxu0 0.0
    %231 = vmatprep.subr.mxu0 0.0
    %232 = vmatpush1.msra.mxu0 0.0
    %233 = vmatprep.subr.mxu0 0.0
    %234 = vmatpush1.msra.mxu0 0.0
    %235 = vmatprep.subr.mxu0 0.0
    %236 = vmatpush1.msra.mxu0 0.0
    %237 = vmatprep.subr.mxu0 0.0
    %238 = vmatpush1.msra.mxu0 0.0
    %239 = vmatprep.subr.mxu0 0.0
    %240 = vmatpush1.msra.mxu0 0.0
    %241 = vmatprep.subr.mxu0 0.0
    %242 = vmatpush1.msra.mxu0 0.0
    %243 = vmatprep.subr.mxu0 0.0
    %244 = vmatpush1.msra.mxu0 0.0
    %245 = vmatprep.subr.mxu0 0.0
    %246 = vmatpush1.msra.mxu0 0.0
    %247 = vmatprep.subr.mxu0 0.0
    %248 = vmatpush1.msra.mxu0 0.0
    %249 = vmatprep.subr.mxu0 0.0
    %250 = vmatpush1.msra.mxu0 0.0
    %251 = vmatprep.subr.mxu0 0.0
    %252 = vmatpush1.msra.mxu0 0.0
    %253 = vmatprep.subr.mxu0 0.0
    %254 = vmatpush1.msra.mxu0 0.0
    %255 = vmatprep.subr.mxu0 0.0
    %256 = vmatpush1.msra.mxu0 0.0
    %257 = vmatprep.subr.mxu0 0.0
    %258 = vmatpush1.msra.mxu0 0.0
    %259 = vmatprep.subr.mxu0 0.0
    %260 = vmatpush1.msra.mxu0 %v221
    %261 = vmatprep.subr.mxu0 0.0
    %262 = vmatpush2.msra.mxu0 0.0
    %263 = vmatprep.subr.mxu0 0.0
    %264 = vmatpush2.msra.mxu0 0.0
    %265 = vmatprep.subr.mxu0 0.0
    %266 = vmatpush2.msra.mxu0 0.0
    %267 = vmatprep.subr.mxu0 0.0
    %268 = vmatpush2.msra.mxu0 0.0
    %269 = vmatprep.subr.mxu0 0.0
    %270 = vmatpush2.msra.mxu0 0.0
    %271 = vmatprep.subr.mxu0 0.0
    %272 = vmatpush2.msra.mxu0 0.0
    %273 = vmatprep.subr.mxu0 0.0
    %274 = vmatpush2.msra.mxu0 0.0
    %275 = vmatprep.subr.mxu0 0.0
    %276 = vmatpush2.msra.mxu0 0.0
    %277 = vmatprep.subr.mxu0 0.0
    %278 = vmatpush2.msra.mxu0 0.0
    %279 = vmatprep.subr.mxu0 0.0
    %280 = vmatpush2.msra.mxu0 0.0
    %281 = vmatprep.subr.mxu0 0.0
    %282 = vmatpush2.msra.mxu0 0.0
    %283 = vmatprep.subr.mxu0 0.0
    %284 = vmatpush2.msra.mxu0 0.0
    %285 = vmatprep.subr.mxu0 0.0
    %286 = vmatpush2.msra.mxu0 0.0
    %287 = vmatprep.subr.mxu0 0.0
    %288 = vmatpush2.msra.mxu0 0.0
    %289 = vmatprep.subr.mxu0 0.0
    %290 = vmatpush2.msra.mxu0 0.0
    %291 = vmatprep.subr.mxu0 0.0
    %292 = vmatpush2.msra.mxu0 0.0
    %293 = vmatprep.mubr.f32.mxu0 0.0
    %294 = vmatmul.mubr.f32.gmra.mxu0 %v224
    %v295 = vpop.f32.mrf.mxu0
    %v296 = vadd.f32 0.0, %v295
    %v297 = vpop.f32.mrf.mxu0
    %298 = vmatprep.mubr.f32.mxu0 0.0
    %299 = vmatmul.mubr.f32.gmra.mxu0 %v227
    %v300 = vpop.f32.mrf.mxu0
    %v301 = vadd.f32 0.0, %v300
    %v302 = vpop.f32.mrf.mxu0
    %303 = vdwg.mxu0
    %v304 = vld [vmem:[%s5] sm:$0x1]
    %v306 = vlaneseq
    %v307 = vshrl.u32 %v306, 7
    %v308 = vsub.s32 0, %v307
    %v309 = vrot.slane %v304, %v308
    %311 = vmatprep.subr.mxu0 0.0
    %312 = vmatpush1.msra.mxu0 0.0
    %313 = vmatprep.subr.mxu0 0.0
    %314 = vmatpush1.msra.mxu0 0.0
    %315 = vmatprep.subr.mxu0 0.0
    %316 = vmatpush1.msra.mxu0 0.0
    %317 = vmatprep.subr.mxu0 0.0
    %318 = vmatpush1.msra.mxu0 0.0
    %319 = vmatprep.subr.mxu0 0.0
    %320 = vmatpush1.msra.mxu0 0.0
    %321 = vmatprep.subr.mxu0 0.0
    %322 = vmatpush1.msra.mxu0 0.0
    %323 = vmatprep.subr.mxu0 0.0
    %324 = vmatpush1.msra.mxu0 0.0
    %325 = vmatprep.subr.mxu0 0.0
    %326 = vmatpush1.msra.mxu0 0.0
    %327 = vmatprep.subr.mxu0 0.0
    %328 = vmatpush1.msra.mxu0 0.0
    %329 = vmatprep.subr.mxu0 0.0
    %330 = vmatpush1.msra.mxu0 0.0
    %331 = vmatprep.subr.mxu0 0.0
    %332 = vmatpush1.msra.mxu0 0.0
    %333 = vmatprep.subr.mxu0 0.0
    %334 = vmatpush1.msra.mxu0 0.0
    %335 = vmatprep.subr.mxu0 0.0
    %336 = vmatpush1.msra.mxu0 0.0
    %337 = vmatprep.subr.mxu0 0.0
    %338 = vmatpush1.msra.mxu0 0.0
    %339 = vmatprep.subr.mxu0 0.0
    %340 = vmatpush1.msra.mxu0 %v301
    %341 = vmatprep.subr.mxu0 0.0
    %342 = vmatpush1.msra.mxu0 %v296
    %343 = vmatprep.subr.mxu0 0.0
    %344 = vmatpush2.msra.mxu0 0.0
    %345 = vmatprep.subr.mxu0 0.0
    %346 = vmatpush2.msra.mxu0 0.0
    %347 = vmatprep.subr.mxu0 0.0
    %348 = vmatpush2.msra.mxu0 0.0
    %349 = vmatprep.subr.mxu0 0.0
    %350 = vmatpush2.msra.mxu0 0.0
    %351 = vmatprep.subr.mxu0 0.0
    %352 = vmatpush2.msra.mxu0 0.0
    %353 = vmatprep.subr.mxu0 0.0
    %354 = vmatpush2.msra.mxu0 0.0
    %355 = vmatprep.subr.mxu0 0.0
    %356 = vmatpush2.msra.mxu0 0.0
    %357 = vmatprep.subr.mxu0 0.0
    %358 = vmatpush2.msra.mxu0 0.0
    %359 = vmatprep.subr.mxu0 0.0
    %360 = vmatpush2.msra.mxu0 0.0
    %361 = vmatprep.subr.mxu0 0.0
    %362 = vmatpush2.msra.mxu0 0.0
    %363 = vmatprep.subr.mxu0 0.0
    %364 = vmatpush2.msra.mxu0 0.0
    %365 = vmatprep.subr.mxu0 0.0
    %366 = vmatpush2.msra.mxu0 0.0
    %367 = vmatprep.subr.mxu0 0.0
    %368 = vmatpush2.msra.mxu0 0.0
    %369 = vmatprep.subr.mxu0 0.0
    %370 = vmatpush2.msra.mxu0 0.0
    %371 = vmatprep.subr.mxu0 0.0
    %372 = vmatpush2.msra.mxu0 0.0
    %373 = vmatprep.subr.mxu0 0.0
    %374 = vmatpush2.msra.mxu0 0.0
    %375 = vmatprep.mubr.f32.mxu0 0.0
    %376 = vmatmul.mubr.f32.gmra.mxu0 %v139
    %v377 = vpop.f32.mrf.mxu0
    %v378 = vadd.f32 %v309, %v377
    %v379 = vpop.f32.mrf.mxu0
    %380 = vmatprep.mubr.f32.mxu0 0.0
    %381 = vmatmul.mubr.f32.gmra.mxu0 %v142
    %v382 = vpop.f32.mrf.mxu0
    %v383 = vadd.f32 %v309, %v382
    %v384 = vpop.f32.mrf.mxu0
    %385 = vdwg.mxu0
    %v386 = vmax.f32 %v378, 0.0
    %v387 = vmax.f32 %v383, 0.0
    %388 = vst.msk [vmem:[#allocation5] sm:$0xff] %vm137, %v386
    %389 = vst.msk [vmem:[#allocation5 + $0x8] sm:$0xff] %vm137, %v387
    // Predicated region
    $region30: #{tpu_custom_call.1} parent=1 // pred_check
      _
    $region31: #{tpu_custom_call.1} parent=1 // pred_check_branch
      %391 = sbr.rel (0) target = $region33
    $region32: #{tpu_custom_call.1} parent=1 // pred_region
      %s393 = ssub.s32 256, 256
      %394 = vsyncadd [#allocation4], %s393
      %s395 = sshll.u32 [#allocation5], 4
      %s396 = int_to_ptr.vmem [resolvable:$true] %s395
      %401 = dma.vmem_to_hbm [thread:$0]  %s396, 256, %s6, [#allocation4], 128, 128, 8
    $region33: #{tpu_custom_call.1} parent=1 // pred_fallthru
      _
    // Predicated region
    $region34: #{tpu_custom_call.1} parent=1 // pred_check
      _
    $region35: #{tpu_custom_call.1} parent=1 // pred_check_branch
      %403 = sbr.rel (0) target = $region37
    $region36: #{tpu_custom_call.1} parent=1 // pred_region
      %404 = dma.done [#allocation4], 256
    $region37: #{tpu_custom_call.1} parent=1 // pred_fallthru
      _
    %405 = vsyncpa [#allocation3], 1
    %406 = vsyncpa [#allocation4], 1

</llo_original>
